<compile_context>
chip_gen: v6e
topology: v6e:2x2x1
jax: 0.10.0
libtpu: 0.0.40
codegen_flags: <defaults>
</compile_context>

<pallas_src>
import functools

import jax
import jax.numpy as jnp
from jax.experimental import pallas as pl
from jax.experimental.pallas import tpu as pltpu

_LANE = 128
_SMALL_L = 512     # below this, pack multiple batch rows per grid step
_MAX_TL = 2048     # beyond ~2048 lanes the HBM-roofline gain is only ~1-5%


def _residual_kernel(x_ref, w_ref, b_ref, o_ref, *, fold_residual):
    # x_ref / o_ref : (tb, C, tl) NCL tile (L on the 128-wide lane axis)
    # w_ref         : (C, C)  channel-mixing weight (grid resident); if
    #                 fold_residual it already contains W + I.
    # b_ref         : (C, 1)  bias, pre-cast to f32 in the wrapper.
    w = w_ref[...]
    bias = b_ref[...]
    for bi in range(x_ref.shape[0]):            # tb is small and static: unrolled
        xb = x_ref[bi]                          # (C, tl)
        # MXU matmul, operands in native dtype, f32 accumulation.
        fx = jnp.dot(w, xb, preferred_element_type=jnp.float32) + bias
        if not fold_residual:
            # Residual not folded into W (kept exact for sub-f32 weights).
            fx = fx + xb.astype(jnp.float32)
        o_ref[bi] = fx.astype(o_ref.dtype)      # single cast at store


def _sublane_multiple(dtype):
    # Packed sublane tile: 8 rows for 4-byte, 16 for 2-byte, 32 for 1-byte dtypes.
    return {4: 8, 2: 16, 1: 32}.get(jnp.dtype(dtype).itemsize, 8)


def _vmem_budget_bytes():
    """Generation-aware tile budget, kept under the default scoped VMEM."""
    budget = 12 * 1024 * 1024        # < v5e's 16 MiB default scoped VMEM (safe everywhere)
    try:
        kind = jax.devices()[0].device_kind.lower()
        if "v6" in kind:             # v6e: 32 MiB default scoped / 128 MiB physical
            budget = 24 * 1024 * 1024
        # v7x: 64 MiB physical / 32 MiB scoped -> keep the conservative budget.
    except Exception:
        pass
    return budget


def _choose_tiles(B, C, L, x_itemsize, w_itemsize, fold_residual, budget):
    """Pick (tb, tl): batch rows and lane columns per grid step.

    Per-step VMEM footprint that is budgeted:
      resident : 2 * C*C*w_itemsize  (W, double-buffered)
                 + 2 * C*128*4       (bias block, lane-padded)
      per lane column, per batch row:
                 2*C*x_itemsize (x) + 2*C*x_itemsize (out)   [double-buffered]
                 + C*4 (f32 accumulator)
                 + C*4 (x->f32 temp, only when the residual is NOT folded)
    """
    fixed = 2 * C * C * w_itemsize + 2 * C * _LANE * 4
    per_col = C * (4 * x_itemsize + 4 + (0 if fold_residual else 4))
    avail = budget - fixed
    if avail < _LANE * per_col:
        # Very large C: resident double-buffered W eats the budget.  A proper
        # channel-tiled (K-loop accumulator) path would keep the tile lane-dense
        # there; for now fall back to a minimal 128-lane tile.
        avail = _LANE * per_col

    if L >= _SMALL_L:
        # Large-L regime: one batch row per step, biggest lane tile that fits.
        tb = 1
        tl = min(_MAX_TL, avail // per_col, L)
        tl = max(_LANE, (tl // _LANE) * _LANE)
    else:
        # Small-L regime: full L per step, fatten the step with batch rows so
        # each grid step amortises the ~0.35 us/step overhead.
        tl = L
        tb = max(1, min(B, pl.cdiv(_SMALL_L, max(L, 1)),
                        avail // max(per_col * L, 1)))

    # v7x has two TensorCores: make sure the (parallel, parallel) grid has at
    # least 2 steps whenever the problem size allows it.
    if pl.cdiv(B, tb) * pl.cdiv(L, tl) < 2:
        if B >= 2:
            tb = pl.cdiv(B, 2)
        elif L >= 2 * _LANE:
            tl = max(_LANE, pl.cdiv(pl.cdiv(L, 2), _LANE) * _LANE)
    return tb, tl


def residual_pointwise_ncl(x_ncl, w, b):
    """out = fn(x) + x computed directly in NCL ([B, C, L]) layout.

    fn(x)[b, co, l] = sum_c W[co, c] * x[b, c, l] + bias[co]   (pointwise Conv1d)
    """
    B, C, L = x_ncl.shape
    assert w.shape == (C, C) and b.shape == (C,)
    sub = _sublane_multiple(x_ncl.dtype)
    assert C % sub == 0, (
        f"channel axis C={C} must be a multiple of the packed sublane tile "
        f"({sub}) for dtype {x_ncl.dtype}")

    # Fold the residual into the matmul when exact (f32 weights): W' = W + I.
    # For bf16 weights keep the explicit add so the residual is bit-exact.
    fold_residual = (w.dtype == jnp.float32)
    w_eff = (w + jnp.eye(C, dtype=w.dtype)) if fold_residual else w
    # NOTE(v5e): for large C (>~256 f32) the matmul becomes MXU-bound on v5e;
    # casting w_eff / x to bf16 here (keeping f32 accumulation) recovers 2-4x.
    b2d = b.reshape(C, 1).astype(jnp.float32)       # cast once, outside the grid

    budget = _vmem_budget_bytes()
    tb, tl = _choose_tiles(B, C, L, jnp.dtype(x_ncl.dtype).itemsize,
                           jnp.dtype(w_eff.dtype).itemsize, fold_residual, budget)
    n_b, n_l = pl.cdiv(B, tb), pl.cdiv(L, tl)

    kernel = functools.partial(_residual_kernel, fold_residual=fold_residual)

    # No padding / slicing for ragged L (or ragged B): Pallas clips the last
    # block's reads/writes, and each output column depends only on the same
    # input column, so clipped garbage never contaminates valid outputs.
    return pl.pallas_call(
        kernel,
        out_shape=jax.ShapeDtypeStruct((B, C, L), x_ncl.dtype),
        grid_spec=pltpu.PrefetchScalarGridSpec(
            num_scalar_prefetch=0,
            grid=(n_b, n_l),
            in_specs=[
                pl.BlockSpec((tb, C, tl), lambda bi, li: (bi, 0, li)),  # x tile
                pl.BlockSpec((C, C), lambda bi, li: (0, 0)),            # W (resident)
                pl.BlockSpec((C, 1), lambda bi, li: (0, 0)),            # bias
            ],
            out_specs=pl.BlockSpec((tb, C, tl), lambda bi, li: (bi, 0, li)),
        ),
        compiler_params=pltpu.CompilerParams(
            dimension_semantics=("parallel", "parallel")),
    )(x_ncl, w_eff, b2d)


def residual_forward_ncl(x_ncl, w, b):
    """PyTorch-facing entry point: x in NCL layout, returns NCL (no transposes)."""
    return residual_pointwise_ncl(x_ncl, w, b)


if __name__ == "__main__":
    key = jax.random.PRNGKey(0)
    kx, kw, kb = jax.random.split(key, 3)

    # --- Test 1: small temporal shapes [B, C, L], f32 (folded-residual path) ---
    B, C, L = 2, 32, 16
    x = jax.random.normal(kx, (B, C, L), dtype=jnp.float32)
    w = jax.random.normal(kw, (C, C), dtype=jnp.float32) * 0.05
    b = jax.random.normal(kb, (C,), dtype=jnp.float32) * 0.01

    out = jax.block_until_ready(residual_forward_ncl(x, w, b))
    ref = jnp.einsum("oc,bcl->bol", w, x) + b[None, :, None] + x
    assert out.shape == (B, C, L)
    assert jnp.allclose(out, ref, atol=1e-5, rtol=1e-5)

    # --- Test 2: ragged L (exercises Pallas block clipping, no pad/slice) ---
    B2, C2, L2 = 1, 8, 600
    x2 = jax.random.normal(kx, (B2, C2, L2), dtype=jnp.float32)
    w2 = jax.random.normal(kw, (C2, C2), dtype=jnp.float32) * 0.05
    b2 = jax.random.normal(kb, (C2,), dtype=jnp.float32) * 0.01
    out2 = jax.block_until_ready(residual_forward_ncl(x2, w2, b2))
    ref2 = jnp.einsum("oc,bcl->bol", w2, x2) + b2[None, :, None] + x2
    assert jnp.allclose(out2, ref2, atol=1e-5, rtol=1e-5)

    # --- Test 3: bf16 (explicit-residual path, C % 16 == 0) ---
    xb = jax.random.normal(kx, (B, C, L), dtype=jnp.bfloat16)
    wb = (jax.random.normal(kw, (C, C), dtype=jnp.float32) * 0.05).astype(jnp.bfloat16)
    bb = (jax.random.normal(kb, (C,), dtype=jnp.float32) * 0.01).astype(jnp.bfloat16)
    out3 = jax.block_until_ready(residual_forward_ncl(xb, wb, bb))
    ref3 = (jnp.einsum("oc,bcl->bol", wb.astype(jnp.float32), xb.astype(jnp.float32))
            + bb.astype(jnp.float32)[None, :, None] + xb.astype(jnp.float32))
    assert jnp.allclose(out3.astype(jnp.float32), ref3, atol=3e-2, rtol=3e-2)

    print("KERNEL_OK")
</pallas_src>

<mosaic_0001>
module attributes {stable_mosaic.version = 11 : i64} {
  func.func @_residual_kernel(%arg0: i32, %arg1: i32, %arg2: memref<1x32x16xf32, #tpu.memory_space<vmem>>, %arg3: memref<32x32xf32, #tpu.memory_space<vmem>>, %arg4: memref<32x1xf32, #tpu.memory_space<vmem>>, %arg5: memref<1x32x16xf32, #tpu.memory_space<vmem>>) attributes {dimension_semantics = [#tpu.dimension_semantics<parallel>, #tpu.dimension_semantics<parallel>], iteration_bounds = array<i64: 2, 1>, scalar_prefetch = 0 : i64, scratch_operands = 0 : i64, tpu.core_type = #tpu.core_type<tc>, window_params = [{transform_indices = @transform_0, window_bounds = array<i64: 1, 32, 16>}, {pipeline_mode = #tpu.pipeline_mode<synchronous>, transform_indices = @transform_1, window_bounds = array<i64: 32, 32>}, {pipeline_mode = #tpu.pipeline_mode<synchronous>, transform_indices = @transform_2, window_bounds = array<i64: 32, 1>}, {transform_indices = @transform_3, window_bounds = array<i64: 1, 32, 16>}]} {
    %c0 = arith.constant 0 : index
    %c0_0 = arith.constant 0 : index
    %0 = vector.load %arg3[%c0, %c0_0] : memref<32x32xf32, #tpu.memory_space<vmem>>, vector<32x32xf32>
    %c0_1 = arith.constant 0 : index
    %c0_2 = arith.constant 0 : index
    %1 = vector.load %arg4[%c0_1, %c0_2] : memref<32x1xf32, #tpu.memory_space<vmem>>, vector<32x1xf32>
    %c0_3 = arith.constant 0 : index
    %c0_4 = arith.constant 0 : index
    %c0_5 = arith.constant 0 : index
    %2 = vector.load %arg2[%c0_3, %c0_4, %c0_5] : memref<1x32x16xf32, #tpu.memory_space<vmem>>, vector<1x32x16xf32>
    %3 = vector.shape_cast %2 : vector<1x32x16xf32> to vector<32x16xf32>
    %cst = arith.constant dense<0.000000e+00> : vector<32x16xf32>
    %4 = tpu.matmul %0, %3, %cst {dimension_numbers = #tpu.dot_dimension_numbers<[1], [0], [0], [1], [0, 0, 1, 1], [], []>} : vector<32x32xf32>, vector<32x16xf32>, vector<32x16xf32> -> vector<32x16xf32>
    %5 = vector.broadcast %1 : vector<32x1xf32> to vector<32x16xf32>
    %6 = arith.addf %4, %5 : vector<32x16xf32>
    %c0_6 = arith.constant 0 : index
    %c0_7 = arith.constant 0 : index
    %c0_8 = arith.constant 0 : index
    %7 = vector.load %arg5[%c0_6, %c0_7, %c0_8] : memref<1x32x16xf32, #tpu.memory_space<vmem>>, vector<1x32x16xf32>
    %8 = vector.shape_cast %7 : vector<1x32x16xf32> to vector<32x16xf32>
    %9 = vector.shape_cast %6 : vector<32x16xf32> to vector<1x32x16xf32>
    tpu.vector_store %arg5[%c0_6, %c0_7, %c0_8], %9 {strides = array<i32>} : memref<1x32x16xf32, #tpu.memory_space<vmem>>, vector<1x32x16xf32>,
    return
  }
  func.func @transform_0(%arg0: i32, %arg1: i32) -> (i32, i32, i32) {
    %c0_i32 = arith.constant 0 : i32
    %c0_i32_0 = arith.constant 0 : i32
    return %arg0, %c0_i32, %arg1 : i32, i32, i32
  }
  func.func @transform_1(%arg0: i32, %arg1: i32) -> (i32, i32) {
    %c0_i32 = arith.constant 0 : i32
    %c0_i32_0 = arith.constant 0 : i32
    %c0_i32_1 = arith.constant 0 : i32
    return %c0_i32, %c0_i32_0 : i32, i32
  }
  func.func @transform_2(%arg0: i32, %arg1: i32) -> (i32, i32) {
    %c0_i32 = arith.constant 0 : i32
    %c0_i32_0 = arith.constant 0 : i32
    %c0_i32_1 = arith.constant 0 : i32
    return %c0_i32, %c0_i32_0 : i32, i32
  }
  func.func @transform_3(%arg0: i32, %arg1: i32) -> (i32, i32, i32) {
    %c0_i32 = arith.constant 0 : i32
    %c0_i32_0 = arith.constant 0 : i32
    return %arg0, %c0_i32, %arg1 : i32, i32, i32
  }
}

</mosaic_0001>

<llo_original>
// kernel: tpu_custom_call.1
$region0: #{tpu_custom_call.1}
  #allocation0 [shape = 'u32[]', space=smem, size = 0x4, offset = 0x4, fixed_abs, tag = 'smem constant byte address 0x4 - core index']
  #allocation1 [shape = 'u32[144,128]{1,0:T(1,128)}', space=vmem, size = 0x12000, scoped, tag = 'internal scratch']
  %s0 = inlined_call_operand.vmem [shape: f32[2,32,16], index: 0, kind: input, shape index: {}]
  %s1 = inlined_call_operand.vmem [shape: f32[32,32], index: 1, kind: input, shape index: {}]
  %s2 = inlined_call_operand.vmem [shape: f32[32,1], index: 2, kind: input, shape index: {}]
  %s3 = inlined_call_operand.vmem [shape: f32[2,32,16], index: 3, kind: output, shape index: {}]
  %s4 = sld [smem:[#allocation0]]
  $region45: #{tpu_custom_call.1} parent=0
    _
  %s6 = ssub.s32 1, %s4
  %s7 = scalar_select 0, %s6, %s4
  loop: start=0, step=1, limit=4
  $region2: #{tpu_custom_call.1} parent=0 // loop_pre_header
    _
  $region3: #{tpu_custom_call.1} parent=0 // loop_header
    %s9 = sphi 0, %s13
    %p10 = scmp.ge.s32.totalorder %s9, 4
    %s16 = sphi 0, %s28
    %s17 = sphi 0, %s24
    %s18 = sphi 0, %s16
    %s19 = sphi 0, %s17
    %s20 = sphi 0, %s18
    %s21 = sphi 0, %s19
    %s33 = sphi 0, %s35
    %s36 = sphi 0, %s33
    %s37 = sphi 0, %s36
    %s53 = sphi 0, %s37
    %s57 = sphi 0, %s57
    %s59 = sphi 0, %s57
    %s60 = sphi 0, %s59
    %s74 = sphi 0, %s60
    %s78 = sphi 0, %s78
    %s80 = sphi 0, %s78
    %s81 = sphi 0, %s80
    %s95 = sphi 0, %s81
    %s103 = sphi 0, %s105
    %s106 = sphi 0, %s103
    %s107 = sphi 0, %s106
    %s123 = sphi 0, %s107
  $region4: #{tpu_custom_call.1} parent=0 // loop_header_branch
    %12 = sbr.rel (%p10) target = $region8
  $region5: #{tpu_custom_call.1} parent=0 // loop_body
    %s14 = ssub.s32 %s9, 1
    %s15 = ssub.s32 %s9, 2
    %s22 = sadd.s32 1, %s17
    %p23 = scmp.ge.s32.totalorder %s22, 1
    %s24 = scalar_select %p23, 0, %s22
    %s25 = sadd.s32 1, %s16
    %s26 = scalar_select %p23, %s25, %s16
    %p27 = scmp.ge.s32.totalorder %s26, 2
    %s28 = scalar_select %p27, 0, %s26
    %s29 = ssub.s32 %s16, %s28
    %s30 = ssub.s32 %s17, %s24
    %s31 = sor.u32 %s29, %s30
    %p32 = scmp.eq.s32.totalorder %s31, 0
    %s34 = sadd.s32 %s33, 1
    %s35 = scalar_select %p32, %s33, %s34
    %p38 = pneg %p32
    %p39 = scmp.eq.s32.totalorder %s9, 1
    %p40 = por %p38, %p39
    %p41 = scmp.ne.s32.totalorder %s33, %s36
    %p42 = scmp.eq.s32.totalorder %s9, 0
    %p43 = por %p41, %p42
    %p44 = scmp.ne.s32.totalorder %s33, %s36
    %p45 = scmp.eq.s32.totalorder %s14, 1
    %p46 = por %p44, %p45
    %p47 = scmp.ne.s32.totalorder %s36, %s37
    %p48 = scmp.eq.s32.totalorder %s14, 0
    %p49 = por %p47, %p48
    %p50 = scmp.ne.s32.totalorder %s36, %s37
    %p51 = scmp.eq.s32.totalorder %s15, 1
    %p52 = por %p50, %p51
    %p54 = scmp.ne.s32.totalorder %s37, %s53
    %p55 = scmp.eq.s32.totalorder %s15, 0
    %p56 = por %p54, %p55
    %s58 = sadd.s32 %s57, 1
    %p61 = scmp.eq.s32.totalorder %s9, 1
    %p62 = scmp.ne.s32.totalorder %s57, %s59
    %p63 = scmp.eq.s32.totalorder %s9, 0
    %p64 = por %p62, %p63
    %p65 = scmp.ne.s32.totalorder %s57, %s59
    %p66 = scmp.eq.s32.totalorder %s14, 1
    %p67 = por %p65, %p66
    %p68 = scmp.ne.s32.totalorder %s59, %s60
    %p69 = scmp.eq.s32.totalorder %s14, 0
    %p70 = por %p68, %p69
    %p71 = scmp.ne.s32.totalorder %s59, %s60
    %p72 = scmp.eq.s32.totalorder %s15, 1
    %p73 = por %p71, %p72
    %p75 = scmp.ne.s32.totalorder %s60, %s74
    %p76 = scmp.eq.s32.totalorder %s15, 0
    %p77 = por %p75, %p76
    %s79 = sadd.s32 %s78, 1
    %p82 = scmp.eq.s32.totalorder %s9, 1
    %p83 = scmp.ne.s32.totalorder %s78, %s80
    %p84 = scmp.eq.s32.totalorder %s9, 0
    %p85 = por %p83, %p84
    %p86 = scmp.ne.s32.totalorder %s78, %s80
    %p87 = scmp.eq.s32.totalorder %s14, 1
    %p88 = por %p86, %p87
    %p89 = scmp.ne.s32.totalorder %s80, %s81
    %p90 = scmp.eq.s32.totalorder %s14, 0
    %p91 = por %p89, %p90
    %p92 = scmp.ne.s32.totalorder %s80, %s81
    %p93 = scmp.eq.s32.totalorder %s15, 1
    %p94 = por %p92, %p93
    %p96 = scmp.ne.s32.totalorder %s81, %s95
    %p97 = scmp.eq.s32.totalorder %s15, 0
    %p98 = por %p96, %p97
    %s99 = ssub.s32 %s16, %s28
    %s100 = ssub.s32 %s17, %s24
    %s101 = sor.u32 %s99, %s100
    %p102 = scmp.eq.s32.totalorder %s101, 0
    %s104 = sadd.s32 %s103, 1
    %s105 = scalar_select %p102, %s103, %s104
    %p108 = pneg %p102
    %p109 = scmp.eq.s32.totalorder %s9, 1
    %p110 = por %p108, %p109
    %p111 = scmp.ne.s32.totalorder %s103, %s106
    %p112 = scmp.eq.s32.totalorder %s9, 0
    %p113 = por %p111, %p112
    %p114 = scmp.ne.s32.totalorder %s103, %s106
    %p115 = scmp.eq.s32.totalorder %s14, 1
    %p116 = por %p114, %p115
    %p117 = scmp.ne.s32.totalorder %s106, %s107
    %p118 = scmp.eq.s32.totalorder %s14, 0
    %p119 = por %p117, %p118
    %p120 = scmp.ne.s32.totalorder %s106, %s107
    %p121 = scmp.eq.s32.totalorder %s15, 1
    %p122 = por %p120, %p121
    %p124 = scmp.ne.s32.totalorder %s107, %s123
    %p125 = scmp.eq.s32.totalorder %s15, 0
    %p126 = por %p124, %p125
    %p127 = scmp.le.s32.totalorder 1, %s9
    %p128 = scmp.lt.s32.totalorder %s9, 3
    %p129 = pnand %p127, %p128
    %p130 = pneg %p129
    // Predicated region
    $region9: #{tpu_custom_call.1} parent=5 // pred_check
      _
    $region10: #{tpu_custom_call.1} parent=5 // pred_check_branch
      %132 = sbr.rel (%p129) target = $region12
    $region11: #{tpu_custom_call.1} parent=5 // pred_region
      %s133 = ssub.s32 %s9, 1
      // Predicated region
      $region13: #{tpu_custom_call.1} parent=11 // pred_check
        %p134 = pneg %p70
      $region14: #{tpu_custom_call.1} parent=11 // pred_check_branch
        %136 = sbr.rel (%p134) target = $region16
      $region15: #{tpu_custom_call.1} parent=11 // pred_region
        _
      $region16: #{tpu_custom_call.1} parent=11 // pred_fallthru
        _
      // Predicated region
      $region17: #{tpu_custom_call.1} parent=11 // pred_check
        %p137 = pneg %p91
      $region18: #{tpu_custom_call.1} parent=11 // pred_check_branch
        %139 = sbr.rel (%p137) target = $region20
      $region19: #{tpu_custom_call.1} parent=11 // pred_region
        _
      $region20: #{tpu_custom_call.1} parent=11 // pred_fallthru
        _
    $region12: #{tpu_custom_call.1} parent=5 // pred_fallthru
      _
    %p140 = scmp.lt.s32.totalorder %s9, 2
    // Predicated region
    $region21: #{tpu_custom_call.1} parent=5 // pred_check
      %p141 = pneg %p140
    $region22: #{tpu_custom_call.1} parent=5 // pred_check_branch
      %143 = sbr.rel (%p141) target = $region24
    $region23: #{tpu_custom_call.1} parent=5 // pred_region
      // Predicated region
      $region25: #{tpu_custom_call.1} parent=23 // pred_check
        %p144 = pneg %p43
      $region26: #{tpu_custom_call.1} parent=23 // pred_check_branch
        %146 = sbr.rel (%p144) target = $region28
      $region27: #{tpu_custom_call.1} parent=23 // pred_region
        %p147 = scmp.lt.s32.totalorder %s16, 1
        %s148 = scalar_select %p147, %s16, 1
        %p149 = scmp.lt.s32.totalorder %s17, 0
        %s150 = scalar_select %p149, %s17, 0
        %s151 = smul.addr %s148, 4
        %s152 = sadd.s32 %s150, %s151
        %s153 = smul.addr %s152, 8
        %s154 = scalar_lea.vmem %s0, %s153
      $region28: #{tpu_custom_call.1} parent=23 // pred_fallthru
        _
    $region24: #{tpu_custom_call.1} parent=5 // pred_fallthru
      _
    %p155 = scmp.le.s32.totalorder 1, %s9
    %p156 = scmp.lt.s32.totalorder %s9, 3
    %p157 = pnand %p155, %p156
    %p158 = pneg %p157
    // Predicated region
    $region29: #{tpu_custom_call.1} parent=5 // pred_check
      _
    $region30: #{tpu_custom_call.1} parent=5 // pred_check_branch
      %160 = sbr.rel (%p157) target = $region32
    $region31: #{tpu_custom_call.1} parent=5 // pred_region
      %s161 = ssub.s32 %s9, 1
      %p162 = scmp.lt.s32.totalorder %s18, 1
      %s163 = scalar_select %p162, %s18, 1
      %p164 = scmp.lt.s32.totalorder %s19, 0
      %s165 = scalar_select %p164, %s19, 0
      %s166 = smul.addr %s163, 4
      %s167 = sadd.s32 %s165, %s166
      %s168 = smul.addr %s167, 8
      %s169 = scalar_lea.vmem %s0, %s168
      %p170 = pneg %p49
      %p171 = pneg %p46
      %p172 = pneg %p70
      %p173 = pneg %p67
      %p174 = pneg %p91
      %p175 = pneg %p88
      %p176 = pneg %p119
      %p177 = pneg %p116
      %p178 = scmp.lt.s32.totalorder %s18, 1
      %s179 = scalar_select %p178, %s18, 1
      %p180 = scmp.lt.s32.totalorder %s19, 0
      %s181 = scalar_select %p180, %s19, 0
      %s182 = smul.addr %s179, 4
      %s183 = sadd.s32 %s181, %s182
      %s184 = smul.addr %s183, 8
      %s185 = scalar_lea.vmem %s3, %s184
      %p186 = scmp.lt.s32.totalorder %s18, 1
      %s187 = scalar_select %p186, %s18, 1
      %p188 = scmp.lt.s32.totalorder %s19, 0
      %s189 = scalar_select %p188, %s19, 0
      %s190 = smul.addr %s187, 4
      %s191 = sadd.s32 %s189, %s190
      %s192 = smul.addr %s191, 8
      %s193 = scalar_lea.vmem %s0, %s192
      %p194 = scmp.lt.s32.totalorder %s18, 1
      %s195 = scalar_select %p194, %s18, 1
      %p196 = scmp.lt.s32.totalorder %s19, 0
      %s197 = scalar_select %p196, %s19, 0
      %s198 = smul.addr %s195, 4
      %s199 = sadd.s32 %s197, %s198
      %s200 = smul.addr %s199, 8
      %s201 = scalar_lea.vmem %s3, %s200
      %v202 = vld [vmem:[%s1] sm:$0xff]
      %v203 = vld [vmem:[%s1 + $0x8] sm:$0xff]
      %v204 = vld [vmem:[%s1 + $0x10] sm:$0xff]
      %v205 = vld [vmem:[%s1 + $0x18] sm:$0xff]
      %v206 = vld [vmem:[%s2] sm:$0xff]
      %v207 = vld [vmem:[%s2 + $0x8] sm:$0xff]
      %v208 = vld [vmem:[%s2 + $0x10] sm:$0xff]
      %v209 = vld [vmem:[%s2 + $0x18] sm:$0xff]
      %v210 = vld [vmem:[%s193] sm:$0xff]
      %v211 = vld [vmem:[%s193 + $0x8] sm:$0xff]
      %v212 = vld [vmem:[%s193 + $0x10] sm:$0xff]
      %v213 = vld [vmem:[%s193 + $0x18] sm:$0xff]
      %215 = vset.pattern.permute.xlu0 0
      %216 = vperm.xlu0 %215, %v206
      %v217 = vpop.permute.xlu0 %216
      %220 = vset.pattern.permute.xlu0 0
      %221 = vperm.xlu0 %220, %v207
      %v222 = vpop.permute.xlu0 %221
      %225 = vset.pattern.permute.xlu0 0
      %226 = vperm.xlu0 %225, %v208
      %v227 = vpop.permute.xlu0 %226
      %230 = vset.pattern.permute.xlu0 0
      %231 = vperm.xlu0 %230, %v209
      %v232 = vpop.permute.xlu0 %231
      %vm234 = vcmask 261120
      %v236 = vsel %vm234, %v202, 0
      %v239 = vsel %vm234, %v203, 0
      %v242 = vsel %vm234, %v204, 0
      %v245 = vsel %vm234, %v205, 0
      %247 = vmatprep.subr.mxu0 0.0
      %248 = vmatpush1.msra.mxu0 0.0
      %249 = vmatprep.subr.mxu0 0.0
      %250 = vmatpush1.msra.mxu0 0.0
      %251 = vmatprep.subr.mxu0 0.0
      %252 = vmatpush1.msra.mxu0 0.0
      %253 = vmatprep.subr.mxu0 0.0
      %254 = vmatpush1.msra.mxu0 0.0
      %255 = vmatprep.subr.mxu0 0.0
      %256 = vmatpush1.msra.mxu0 0.0
      %257 = vmatprep.subr.mxu0 0.0
      %258 = vmatpush1.msra.mxu0 0.0
      %259 = vmatprep.subr.mxu0 0.0
      %260 = vmatpush1.msra.mxu0 0.0
      %261 = vmatprep.subr.mxu0 0.0
      %262 = vmatpush1.msra.mxu0 0.0
      %263 = vmatprep.subr.mxu0 0.0
      %264 = vmatpush1.msra.mxu0 0.0
      %265 = vmatprep.subr.mxu0 0.0
      %266 = vmatpush1.msra.mxu0 0.0
      %267 = vmatprep.subr.mxu0 0.0
      %268 = vmatpush1.msra.mxu0 0.0
      %269 = vmatprep.subr.mxu0 0.0
      %270 = vmatpush1.msra.mxu0 0.0
      %271 = vmatprep.subr.mxu0 0.0
      %272 = vmatpush1.msra.mxu0 %v213
      %273 = vmatprep.subr.mxu0 0.0
      %274 = vmatpush1.msra.mxu0 %v212
      %275 = vmatprep.subr.mxu0 0.0
      %276 = vmatpush1.msra.mxu0 %v211
      %277 = vmatprep.subr.mxu0 0.0
      %278 = vmatpush1.msra.mxu0 %v210
      %279 = vmatprep.subr.mxu0 0.0
      %280 = vmatpush2.msra.mxu0 0.0
      %281 = vmatprep.subr.mxu0 0.0
      %282 = vmatpush2.msra.mxu0 0.0
      %283 = vmatprep.subr.mxu0 0.0
      %284 = vmatpush2.msra.mxu0 0.0
      %285 = vmatprep.subr.mxu0 0.0
      %286 = vmatpush2.msra.mxu0 0.0
      %287 = vmatprep.subr.mxu0 0.0
      %288 = vmatpush2.msra.mxu0 0.0
      %289 = vmatprep.subr.mxu0 0.0
      %290 = vmatpush2.msra.mxu0 0.0
      %291 = vmatprep.subr.mxu0 0.0
      %292 = vmatpush2.msra.mxu0 0.0
      %293 = vmatprep.subr.mxu0 0.0
      %294 = vmatpush2.msra.mxu0 0.0
      %295 = vmatprep.subr.mxu0 0.0
      %296 = vmatpush2.msra.mxu0 0.0
      %297 = vmatprep.subr.mxu0 0.0
      %298 = vmatpush2.msra.mxu0 0.0
      %299 = vmatprep.subr.mxu0 0.0
      %300 = vmatpush2.msra.mxu0 0.0
      %301 = vmatprep.subr.mxu0 0.0
      %302 = vmatpush2.msra.mxu0 0.0
      %303 = vmatprep.subr.mxu0 0.0
      %304 = vmatpush2.msra.mxu0 0.0
      %305 = vmatprep.subr.mxu0 0.0
      %306 = vmatpush2.msra.mxu0 0.0
      %307 = vmatprep.subr.mxu0 0.0
      %308 = vmatpush2.msra.mxu0 0.0
      %309 = vmatprep.subr.mxu0 0.0
      %310 = vmatpush2.msra.mxu0 0.0
      %311 = vmatprep.mubr.f32.mxu0 0.0
      %312 = vmatmul.mubr.f32.gmra.mxu0 %v236
      %v313 = vpop.f32.mrf.mxu0
      %v314 = vadd.f32 %v217, %v313
      %v315 = vpop.f32.mrf.mxu0
      %316 = vmatprep.mubr.f32.mxu0 0.0
      %317 = vmatmul.mubr.f32.gmra.mxu0 %v239
      %v318 = vpop.f32.mrf.mxu0
      %v319 = vadd.f32 %v222, %v318
      %v320 = vpop.f32.mrf.mxu0
      %321 = vmatprep.mubr.f32.mxu0 0.0
      %322 = vmatmul.mubr.f32.gmra.mxu0 %v242
      %v323 = vpop.f32.mrf.mxu0
      %v324 = vadd.f32 %v227, %v323
      %v325 = vpop.f32.mrf.mxu0
      %326 = vmatprep.mubr.f32.mxu0 0.0
      %327 = vmatmul.mubr.f32.gmra.mxu0 %v245
      %v328 = vpop.f32.mrf.mxu0
      %v329 = vadd.f32 %v232, %v328
      %v330 = vpop.f32.mrf.mxu0
      %331 = vdwg.mxu0
      %vm332 = vcmask 130048
      %333 = vst.msk [vmem:[%s201] sm:$0xff] %vm332, %v314
      %334 = vst.msk [vmem:[%s201 + $0x8] sm:$0xff] %vm332, %v319
      %335 = vst.msk [vmem:[%s201 + $0x10] sm:$0xff] %vm332, %v324
      %336 = vst.msk [vmem:[%s201 + $0x18] sm:$0xff] %vm332, %v329
      %p337 = scmp.lt.s32.totalorder %s18, 1
      %s338 = scalar_select %p337, %s18, 1
      %p339 = scmp.lt.s32.totalorder %s19, 0
      %s340 = scalar_select %p339, %s19, 0
      %s341 = smul.addr %s338, 4
      %s342 = sadd.s32 %s340, %s341
      %s343 = smul.addr %s342, 8
      %s344 = scalar_lea.vmem %s3, %s343
      // Predicated region
      $region33: #{tpu_custom_call.1} parent=31 // pred_check
        %p345 = pneg %p116
      $region34: #{tpu_custom_call.1} parent=31 // pred_check_branch
        %347 = sbr.rel (%p345) target = $region36
      $region35: #{tpu_custom_call.1} parent=31 // pred_region
        _
      $region36: #{tpu_custom_call.1} parent=31 // pred_fallthru
        _
    $region32: #{tpu_custom_call.1} parent=5 // pred_fallthru
      _
    %p348 = scmp.le.s32.totalorder 2, %s9
    // Predicated region
    $region37: #{tpu_custom_call.1} parent=5 // pred_check
      %p349 = pneg %p348
    $region38: #{tpu_custom_call.1} parent=5 // pred_check_branch
      %351 = sbr.rel (%p349) target = $region40
    $region39: #{tpu_custom_call.1} parent=5 // pred_region
      %s352 = ssub.s32 %s9, 2
      // Predicated region
      $region41: #{tpu_custom_call.1} parent=39 // pred_check
        %p353 = pneg %p122
      $region42: #{tpu_custom_call.1} parent=39 // pred_check_branch
        %355 = sbr.rel (%p353) target = $region44
      $region43: #{tpu_custom_call.1} parent=39 // pred_region
        %p356 = scmp.lt.s32.totalorder %s20, 1
        %s357 = scalar_select %p356, %s20, 1
        %p358 = scmp.lt.s32.totalorder %s21, 0
        %s359 = scalar_select %p358, %s21, 0
        %s360 = smul.addr %s357, 4
        %s361 = sadd.s32 %s359, %s360
        %s362 = smul.addr %s361, 8
        %s363 = scalar_lea.vmem %s3, %s362
      $region44: #{tpu_custom_call.1} parent=39 // pred_fallthru
        _
    $region40: #{tpu_custom_call.1} parent=5 // pred_fallthru
      _
  $region6: #{tpu_custom_call.1} parent=0 // loop_footer
    %s13 = sadd.s32 1, %s9
  $region7: #{tpu_custom_call.1} parent=0 // loop_footer_branch
    %8 = sbr.rel target = $region3
  $region8: #{tpu_custom_call.1} parent=0 // loop_exit
    _

</llo_original>
